<compile_context>
chip_gen: v6e
topology: v6e:2x2x1
jax: 0.10.0
libtpu: 0.0.40
codegen_flags: <defaults>
</compile_context>

<pallas_src>
import functools

import jax
import jax.numpy as jnp
from jax.experimental import pallas as pl
from jax.experimental.pallas import tpu as pltpu


def _encoding_kernel(f_ref, g_ref, w_ref, cb_ref, gamma_ref, beta_ref, mask_ref,
                     out_ref, mean_ref, *, bt, lp, wop1, inv_count):
    # f_ref:    (bt, 4*Cin, Sp)  bf16 parity-split padded input (flat spatial)
    # g_ref:    (bt, Cout, 1)    f32  Linear(global_track), hoisted
    # w_ref:    (4, Cout, 4*Cin) bf16 packed conv weights (2x2 groups)
    # cb/gamma/beta: (Cout, 1)   f32
    # mask_ref: (1, lp)          f32  1.0 on valid conv-output positions
    # out_ref:  (bt, Cout, lp)   f32  (lane-dense; wrapper strips junk columns)
    # mean_ref: (bt, Cout, 1)    f32  pre-norm spatial mean
    maskf = mask_ref[...]                              # hoisted out of sample loop
    offs = (0, 1, wop1, wop1 + 1)                      # (dr, ds)=(0,0),(0,1),(1,0),(1,1)

    for s in range(bt):                                # static unroll; bt kept small
        fs = f_ref[s]                                  # (4Cin, Sp) bf16, one VMEM load
        # Fused conv: 4 shifted bf16 matmuls, spatial axis on the MXU N dim.
        y = jnp.dot(w_ref[0], fs[:, 0:lp], preferred_element_type=jnp.float32)
        for g in range(1, 4):
            o = offs[g]
            y = y + jnp.dot(w_ref[g], fs[:, o:o + lp],
                            preferred_element_type=jnp.float32)
        y = y + cb_ref[...]                            # conv bias, (Cout,1) bcast

        # Spatial stats over valid positions only (junk columns masked out).
        ym = y * maskf
        mu = jnp.sum(ym, axis=1, keepdims=True) * inv_count       # (Cout, 1)
        msq = jnp.sum(ym * y, axis=1, keepdims=True) * inv_count  # E[y^2]
        var = jnp.maximum(msq - mu * mu, 0.0)                     # clamp (review)
        mean_ref[s] = mu

        # InstanceNorm affine folded with the hoisted global-track vector:
        #   out = y*scale + shift, scale = gamma/std, shift = beta - mu*scale + g
        scale = gamma_ref[...] * jax.lax.rsqrt(var + 1e-5)
        shift = beta_ref[...] - mu * scale + g_ref[s]
        out_ref[s] = (y * scale + shift).astype(out_ref.dtype)    # lane-dense store


def _round_up(x, m):
    return (x + m - 1) // m * m


def _vmem_budget():
    """Returns (per-step block budget, vmem_limit_bytes), generation aware."""
    cap = 64 << 20                                     # conservative: v7x physical
    try:
        cap = pltpu.get_tpu_info().vmem_capacity_bytes
    except Exception:
        pass
    if cap >= (96 << 20):                              # v5e / v6e: 128 MiB physical
        return 48 << 20, 96 << 20
    return 14 << 20, 40 << 20                          # v7x: 64 MiB physical


def _pick_batch_tile(n, per_sample_bytes, budget):
    # Samples per grid step: fill the VMEM budget (MXU fill does not depend on
    # bt in this formulation), keep the static unroll small, bt must divide n.
    cap = max(1, min(budget // max(per_sample_bytes, 1), 16, n))
    bt = 1
    for d in range(1, n + 1):
        if n % d == 0 and d <= cap:
            bt = d
    if n // bt < 2:                                    # prefer >=2 steps (megacore)
        for d in range(bt - 1, 0, -1):
            if n % d == 0 and n // d >= 2 and (d * per_sample_bytes >= (512 << 10)
                                               or n <= 8):
                bt = d
                break
    return bt


def encoding_layer_pallas(x, global_track, conv_w, conv_b, gamma, beta,
                          lin_wt, lin_b):
    """x: (N, Cin, H, W) NCHW.  conv_w: (Cout, Cin, 4, 4) torch layout.
    lin_wt: (Cout, Cout) = torch Linear weight already transposed (gt @ lin_wt)."""
    N, Cin, H, W = x.shape
    Cout = conv_w.shape[0]
    assert H % 2 == 0 and W % 2 == 0
    Ho, Wo = H // 2, W // 2
    C4 = 4 * Cin
    Wop1 = Wo + 1
    L = Ho * Wop1                        # flat blocked-spatial length (incl. junk col)
    Lp = _round_up(L, 128)               # lane-dense kernel output width
    Sp = _round_up(Lp + Wo + 2, 128)     # F flat length: covers the max shifted slice

    # ---- wrapper layout glue (no data replication) ----
    # LeakyReLU on the unreplicated input, zero-pad by 1, parity-split so the
    # stride-2 4x4 conv becomes a stride-1 2x2 conv over F.
    xa = jnp.where(x >= 0, x, 0.2 * x)
    xpad = jnp.pad(xa, ((0, 0), (0, 0), (1, 1), (1, 1)))            # (N,Cin,H+2,W+2)
    f = xpad.reshape(N, Cin, Ho + 1, 2, Wop1, 2)                     # (n,ci,a,pr,b,pc)
    f = jnp.transpose(f, (0, 3, 5, 1, 2, 4)).reshape(N, C4, (Ho + 1) * Wop1)
    f = jnp.pad(f, ((0, 0), (0, 0), (0, Sp - (Ho + 1) * Wop1))).astype(jnp.bfloat16)

    # Packed weights: Wg[dr*2+ds][co, (pr*2+pc)*Cin+ci] = conv_w[co,ci,2dr+pr,2ds+pc]
    wg = conv_w.reshape(Cout, Cin, 2, 2, 2, 2)                       # (co,ci,dr,pr,ds,pc)
    wg = jnp.transpose(wg, (2, 4, 0, 3, 5, 1)).reshape(4, Cout, C4).astype(jnp.bfloat16)

    cb2 = conv_b.reshape(Cout, 1).astype(jnp.float32)
    g2 = gamma.reshape(Cout, 1).astype(jnp.float32)
    b2 = beta.reshape(Cout, 1).astype(jnp.float32)

    # MergeLayer Linear hoisted out of the kernel: one batched XLA matmul.
    gvec = (global_track @ lin_wt + lin_b).astype(jnp.float32).reshape(N, Cout, 1)

    # Validity mask over the flat blocked-spatial axis (junk column b==Wo and
    # the lane-padding tail are excluded from the InstanceNorm statistics).
    t = jnp.arange(Lp)
    maskf = (((t % Wop1) != Wo) & (t < L)).astype(jnp.float32).reshape(1, Lp)

    budget, vmem_limit = _vmem_budget()
    per_sample = (2 * C4 * Sp * 2        # bf16 F block, double-buffered
                  + 2 * Cout * Lp * 4    # f32 out block, double-buffered
                  + 4 * Cout * Lp * 4    # f32 temporaries (y, y*mask, scaled out)
                  + 4 * C4 * Lp * 2)     # shifted-slice relayout copies
    bt = _pick_batch_tile(N, per_sample, budget)

    kernel = functools.partial(_encoding_kernel, bt=bt, lp=Lp, wop1=Wop1,
                               inv_count=1.0 / float(Ho * Wo))

    out_flat, mean = pl.pallas_call(
        kernel,
        out_shape=(jax.ShapeDtypeStruct((N, Cout, Lp), jnp.float32),
                   jax.ShapeDtypeStruct((N, Cout, 1), jnp.float32)),
        grid=(N // bt,),
        in_specs=[
            pl.BlockSpec((bt, C4, Sp), lambda n: (n, 0, 0)),
            pl.BlockSpec((bt, Cout, 1), lambda n: (n, 0, 0)),
            pl.BlockSpec((4, Cout, C4), lambda n: (0, 0, 0)),
            pl.BlockSpec((Cout, 1), lambda n: (0, 0)),
            pl.BlockSpec((Cout, 1), lambda n: (0, 0)),
            pl.BlockSpec((Cout, 1), lambda n: (0, 0)),
            pl.BlockSpec((1, Lp), lambda n: (0, 0)),
        ],
        out_specs=(pl.BlockSpec((bt, Cout, Lp), lambda n: (n, 0, 0)),
                   pl.BlockSpec((bt, Cout, 1), lambda n: (n, 0, 0))),
        compiler_params=pltpu.CompilerParams(
            dimension_semantics=("parallel",),
            vmem_limit_bytes=vmem_limit),
    )(f, gvec, wg, cb2, g2, b2, maskf)

    # Strip the junk column (b == Wo) and the lane-padding tail.
    out = out_flat[:, :, :L].reshape(N, Cout, Ho, Wop1)[:, :, :, :Wo]
    return out, mean.reshape(N, Cout)


def encoding_layer_reference(x, global_track, conv_w, conv_b, gamma, beta,
                             lin_wt, lin_b):
    xa = jnp.where(x >= 0, x, 0.2 * x)
    y = jax.lax.conv_general_dilated(
        xa, conv_w, window_strides=(2, 2), padding=((1, 1), (1, 1)),
        dimension_numbers=('NCHW', 'OIHW', 'NCHW'),
        precision=jax.lax.Precision.HIGHEST)
    y = y + conv_b.reshape(1, -1, 1, 1)
    mean = jnp.mean(y, axis=(2, 3))
    mu = jnp.mean(y, axis=(2, 3), keepdims=True)
    var = jnp.mean((y - mu) ** 2, axis=(2, 3), keepdims=True)
    yn = (y - mu) * jax.lax.rsqrt(var + 1e-5)
    yn = yn * gamma.reshape(1, -1, 1, 1) + beta.reshape(1, -1, 1, 1)
    g = global_track @ lin_wt + lin_b
    return yn + g[:, :, None, None], mean


if __name__ == "__main__":
    N, Cin, H, W = 2, 4, 16, 16
    Cout = 8

    key = jax.random.PRNGKey(0)
    ks = jax.random.split(key, 8)
    x = jax.random.normal(ks[0], (N, Cin, H, W), jnp.float32)
    global_track = jax.random.normal(ks[1], (N, Cout), jnp.float32)
    conv_w = 0.1 * jax.random.normal(ks[2], (Cout, Cin, 4, 4), jnp.float32)
    conv_b = 0.1 * jax.random.normal(ks[3], (Cout,), jnp.float32)
    gamma = 1.0 + 0.1 * jax.random.normal(ks[4], (Cout,), jnp.float32)
    beta = 0.1 * jax.random.normal(ks[5], (Cout,), jnp.float32)
    lin_wt = 0.1 * jax.random.normal(ks[6], (Cout, Cout), jnp.float32)
    lin_b = 0.1 * jax.random.normal(ks[7], (Cout,), jnp.float32)

    fn = jax.jit(encoding_layer_pallas)
    out, mean = fn(x, global_track, conv_w, conv_b, gamma, beta, lin_wt, lin_b)
    out = jax.block_until_ready(out)
    mean = jax.block_until_ready(mean)

    ref_out, ref_mean = encoding_layer_reference(x, global_track, conv_w, conv_b,
                                                 gamma, beta, lin_wt, lin_b)

    assert out.shape == (N, Cout, H // 2, W // 2)
    assert mean.shape == (N, Cout)
    # Kernel matmul operands are bf16 (single MXU pass, f32 accumulate); the
    # reference conv is f32 HIGHEST, so tolerance is at the bf16 level.
    assert jnp.allclose(out, ref_out, atol=2e-2, rtol=2e-2), \
        f"max err {jnp.max(jnp.abs(out - ref_out))}"
    assert jnp.allclose(mean, ref_mean, atol=2e-2, rtol=2e-2), \
        f"max err {jnp.max(jnp.abs(mean - ref_mean))}"

    print("KERNEL_OK")
</pallas_src>

<mosaic_0001>
module attributes {stable_mosaic.version = 11 : i64} {
  func.func @_encoding_kernel(%arg0: i32, %arg1: memref<1x16x256xbf16, #tpu.memory_space<vmem>>, %arg2: memref<1x8x1xf32, #tpu.memory_space<vmem>>, %arg3: memref<4x8x16xbf16, #tpu.memory_space<vmem>>, %arg4: memref<8x1xf32, #tpu.memory_space<vmem>>, %arg5: memref<8x1xf32, #tpu.memory_space<vmem>>, %arg6: memref<8x1xf32, #tpu.memory_space<vmem>>, %arg7: memref<1x128xf32, #tpu.memory_space<vmem>>, %arg8: memref<1x8x128xf32, #tpu.memory_space<vmem>>, %arg9: memref<1x8x1xf32, #tpu.memory_space<vmem>>) attributes {dimension_semantics = [#tpu.dimension_semantics<parallel>], iteration_bounds = array<i64: 2>, scalar_prefetch = 0 : i64, scratch_operands = 0 : i64, tpu.core_type = #tpu.core_type<tc>, window_params = [{transform_indices = @transform_0, window_bounds = array<i64: 1, 16, 256>}, {transform_indices = @transform_1, window_bounds = array<i64: 1, 8, 1>}, {pipeline_mode = #tpu.pipeline_mode<synchronous>, transform_indices = @transform_2, window_bounds = array<i64: 4, 8, 16>}, {pipeline_mode = #tpu.pipeline_mode<synchronous>, transform_indices = @transform_3, window_bounds = array<i64: 8, 1>}, {pipeline_mode = #tpu.pipeline_mode<synchronous>, transform_indices = @transform_4, window_bounds = array<i64: 8, 1>}, {pipeline_mode = #tpu.pipeline_mode<synchronous>, transform_indices = @transform_5, window_bounds = array<i64: 8, 1>}, {pipeline_mode = #tpu.pipeline_mode<synchronous>, transform_indices = @transform_6, window_bounds = array<i64: 1, 128>}, {transform_indices = @transform_7, window_bounds = array<i64: 1, 8, 128>}, {transform_indices = @transform_8, window_bounds = array<i64: 1, 8, 1>}]} {
    %c0 = arith.constant 0 : index
    %c0_0 = arith.constant 0 : index
    %0 = vector.load %arg7[%c0, %c0_0] : memref<1x128xf32, #tpu.memory_space<vmem>>, vector<1x128xf32>
    %c0_1 = arith.constant 0 : index
    %c0_2 = arith.constant 0 : index
    %c0_3 = arith.constant 0 : index
    %1 = vector.load %arg1[%c0_1, %c0_2, %c0_3] : memref<1x16x256xbf16, #tpu.memory_space<vmem>>, vector<1x16x256xbf16>
    %2 = vector.shape_cast %1 : vector<1x16x256xbf16> to vector<16x256xbf16>
    %c0_4 = arith.constant 0 : index
    %c0_5 = arith.constant 0 : index
    %c0_6 = arith.constant 0 : index
    %3 = vector.load %arg3[%c0_4, %c0_5, %c0_6] : memref<4x8x16xbf16, #tpu.memory_space<vmem>>, vector<1x8x16xbf16>
    %4 = vector.shape_cast %3 : vector<1x8x16xbf16> to vector<8x16xbf16>
    %5 = vector.extract_strided_slice %2 {offsets = [0, 0], sizes = [16, 128], strides = [1, 1]} : vector<16x256xbf16> to vector<16x128xbf16>
    %cst = arith.constant dense<0.000000e+00> : vector<8x128xf32>
    %6 = tpu.matmul %4, %5, %cst {dimension_numbers = #tpu.dot_dimension_numbers<[1], [0], [0], [1], [0, 0, 1, 1], [], []>} : vector<8x16xbf16>, vector<16x128xbf16>, vector<8x128xf32> -> vector<8x128xf32>
    %c1 = arith.constant 1 : index
    %c0_7 = arith.constant 0 : index
    %c0_8 = arith.constant 0 : index
    %7 = vector.load %arg3[%c1, %c0_7, %c0_8] : memref<4x8x16xbf16, #tpu.memory_space<vmem>>, vector<1x8x16xbf16>
    %8 = vector.shape_cast %7 : vector<1x8x16xbf16> to vector<8x16xbf16>
    %9 = vector.extract_strided_slice %2 {offsets = [0, 1], sizes = [16, 128], strides = [1, 1]} : vector<16x256xbf16> to vector<16x128xbf16>
    %cst_9 = arith.constant dense<0.000000e+00> : vector<8x128xf32>
    %10 = tpu.matmul %8, %9, %cst_9 {dimension_numbers = #tpu.dot_dimension_numbers<[1], [0], [0], [1], [0, 0, 1, 1], [], []>} : vector<8x16xbf16>, vector<16x128xbf16>, vector<8x128xf32> -> vector<8x128xf32>
    %11 = arith.addf %6, %10 : vector<8x128xf32>
    %c2 = arith.constant 2 : index
    %c0_10 = arith.constant 0 : index
    %c0_11 = arith.constant 0 : index
    %12 = vector.load %arg3[%c2, %c0_10, %c0_11] : memref<4x8x16xbf16, #tpu.memory_space<vmem>>, vector<1x8x16xbf16>
    %13 = vector.shape_cast %12 : vector<1x8x16xbf16> to vector<8x16xbf16>
    %14 = vector.extract_strided_slice %2 {offsets = [0, 9], sizes = [16, 128], strides = [1, 1]} : vector<16x256xbf16> to vector<16x128xbf16>
    %cst_12 = arith.constant dense<0.000000e+00> : vector<8x128xf32>
    %15 = tpu.matmul %13, %14, %cst_12 {dimension_numbers = #tpu.dot_dimension_numbers<[1], [0], [0], [1], [0, 0, 1, 1], [], []>} : vector<8x16xbf16>, vector<16x128xbf16>, vector<8x128xf32> -> vector<8x128xf32>
    %16 = arith.addf %11, %15 : vector<8x128xf32>
    %c3 = arith.constant 3 : index
    %c0_13 = arith.constant 0 : index
    %c0_14 = arith.constant 0 : index
    %17 = vector.load %arg3[%c3, %c0_13, %c0_14] : memref<4x8x16xbf16, #tpu.memory_space<vmem>>, vector<1x8x16xbf16>
    %18 = vector.shape_cast %17 : vector<1x8x16xbf16> to vector<8x16xbf16>
    %19 = vector.extract_strided_slice %2 {offsets = [0, 10], sizes = [16, 128], strides = [1, 1]} : vector<16x256xbf16> to vector<16x128xbf16>
    %cst_15 = arith.constant dense<0.000000e+00> : vector<8x128xf32>
    %20 = tpu.matmul %18, %19, %cst_15 {dimension_numbers = #tpu.dot_dimension_numbers<[1], [0], [0], [1], [0, 0, 1, 1], [], []>} : vector<8x16xbf16>, vector<16x128xbf16>, vector<8x128xf32> -> vector<8x128xf32>
    %21 = arith.addf %16, %20 : vector<8x128xf32>
    %c0_16 = arith.constant 0 : index
    %c0_17 = arith.constant 0 : index
    %22 = vector.load %arg4[%c0_16, %c0_17] : memref<8x1xf32, #tpu.memory_space<vmem>>, vector<8x1xf32>
    %23 = vector.broadcast %22 : vector<8x1xf32> to vector<8x128xf32>
    %24 = arith.addf %21, %23 : vector<8x128xf32>
    %25 = vector.broadcast %0 : vector<1x128xf32> to vector<8x128xf32>
    %26 = arith.mulf %24, %25 : vector<8x128xf32>
    %cst_18 = arith.constant dense<0.000000e+00> : vector<8xf32>
    %27 = vector.multi_reduction <add>, %26, %cst_18 [1] : vector<8x128xf32> to vector<8xf32>
    %28 = vector.shape_cast %27 : vector<8xf32> to vector<8x1xf32>
    %cst_19 = arith.constant 1.562500e-02 : f32
    %29 = vector.broadcast %cst_19 : f32 to vector<8x1xf32>
    %30 = arith.mulf %28, %29 : vector<8x1xf32>
    %31 = arith.mulf %26, %24 : vector<8x128xf32>
    %cst_20 = arith.constant dense<0.000000e+00> : vector<8xf32>
    %32 = vector.multi_reduction <add>, %31, %cst_20 [1] : vector<8x128xf32> to vector<8xf32>
    %33 = vector.shape_cast %32 : vector<8xf32> to vector<8x1xf32>
    %cst_21 = arith.constant 1.562500e-02 : f32
    %34 = vector.broadcast %cst_21 : f32 to vector<8x1xf32>
    %35 = arith.mulf %33, %34 : vector<8x1xf32>
    %36 = arith.mulf %30, %30 : vector<8x1xf32>
    %37 = arith.subf %35, %36 : vector<8x1xf32>
    %cst_22 = arith.constant 0.000000e+00 : f32
    %38 = vector.broadcast %cst_22 : f32 to vector<8x1xf32>
    %39 = arith.maximumf %37, %38 : vector<8x1xf32>
    %c0_23 = arith.constant 0 : index
    %c0_24 = arith.constant 0 : index
    %c0_25 = arith.constant 0 : index
    %40 = vector.load %arg9[%c0_23, %c0_24, %c0_25] : memref<1x8x1xf32, #tpu.memory_space<vmem>>, vector<1x8x1xf32>
    %41 = vector.shape_cast %40 : vector<1x8x1xf32> to vector<8x1xf32>
    %42 = vector.shape_cast %30 : vector<8x1xf32> to vector<1x8x1xf32>
    tpu.vector_store %arg9[%c0_23, %c0_24, %c0_25], %42 {strides = array<i32>} : memref<1x8x1xf32, #tpu.memory_space<vmem>>, vector<1x8x1xf32>,
    %c0_26 = arith.constant 0 : index
    %c0_27 = arith.constant 0 : index
    %43 = vector.load %arg5[%c0_26, %c0_27] : memref<8x1xf32, #tpu.memory_space<vmem>>, vector<8x1xf32>
    %cst_28 = arith.constant 9.99999974E-6 : f32
    %44 = vector.broadcast %cst_28 : f32 to vector<8x1xf32>
    %45 = arith.addf %39, %44 : vector<8x1xf32>
    %46 = math.rsqrt %45 : vector<8x1xf32>
    %47 = arith.mulf %43, %46 : vector<8x1xf32>
    %c0_29 = arith.constant 0 : index
    %c0_30 = arith.constant 0 : index
    %48 = vector.load %arg6[%c0_29, %c0_30] : memref<8x1xf32, #tpu.memory_space<vmem>>, vector<8x1xf32>
    %49 = arith.mulf %30, %47 : vector<8x1xf32>
    %50 = arith.subf %48, %49 : vector<8x1xf32>
    %c0_31 = arith.constant 0 : index
    %c0_32 = arith.constant 0 : index
    %c0_33 = arith.constant 0 : index
    %51 = vector.load %arg2[%c0_31, %c0_32, %c0_33] : memref<1x8x1xf32, #tpu.memory_space<vmem>>, vector<1x8x1xf32>
    %52 = vector.shape_cast %51 : vector<1x8x1xf32> to vector<8x1xf32>
    %53 = arith.addf %50, %52 : vector<8x1xf32>
    %54 = vector.broadcast %47 : vector<8x1xf32> to vector<8x128xf32>
    %55 = arith.mulf %24, %54 : vector<8x128xf32>
    %56 = vector.broadcast %53 : vector<8x1xf32> to vector<8x128xf32>
    %57 = arith.addf %55, %56 : vector<8x128xf32>
    %c0_34 = arith.constant 0 : index
    %c0_35 = arith.constant 0 : index
    %c0_36 = arith.constant 0 : index
    %58 = vector.load %arg8[%c0_34, %c0_35, %c0_36] : memref<1x8x128xf32, #tpu.memory_space<vmem>>, vector<1x8x128xf32>
    %59 = vector.shape_cast %58 : vector<1x8x128xf32> to vector<8x128xf32>
    %60 = vector.shape_cast %57 : vector<8x128xf32> to vector<1x8x128xf32>
    tpu.vector_store %arg8[%c0_34, %c0_35, %c0_36], %60 {strides = array<i32>} : memref<1x8x128xf32, #tpu.memory_space<vmem>>, vector<1x8x128xf32>,
    return
  }
  func.func @transform_0(%arg0: i32) -> (i32, i32, i32) {
    %c0_i32 = arith.constant 0 : i32
    %c0_i32_0 = arith.constant 0 : i32
    %c0_i32_1 = arith.constant 0 : i32
    return %arg0, %c0_i32, %c0_i32_0 : i32, i32, i32
  }
  func.func @transform_1(%arg0: i32) -> (i32, i32, i32) {
    %c0_i32 = arith.constant 0 : i32
    %c0_i32_0 = arith.constant 0 : i32
    %c0_i32_1 = arith.constant 0 : i32
    return %arg0, %c0_i32, %c0_i32_0 : i32, i32, i32
  }
  func.func @transform_2(%arg0: i32) -> (i32, i32, i32) {
    %c0_i32 = arith.constant 0 : i32
    %c0_i32_0 = arith.constant 0 : i32
    %c0_i32_1 = arith.constant 0 : i32
    %c0_i32_2 = arith.constant 0 : i32
    return %c0_i32, %c0_i32_0, %c0_i32_1 : i32, i32, i32
  }
  func.func @transform_3(%arg0: i32) -> (i32, i32) {
    %c0_i32 = arith.constant 0 : i32
    %c0_i32_0 = arith.constant 0 : i32
    %c0_i32_1 = arith.constant 0 : i32
    return %c0_i32, %c0_i32_0 : i32, i32
  }
  func.func @transform_4(%arg0: i32) -> (i32, i32) {
    %c0_i32 = arith.constant 0 : i32
    %c0_i32_0 = arith.constant 0 : i32
    %c0_i32_1 = arith.constant 0 : i32
    return %c0_i32, %c0_i32_0 : i32, i32
  }
  func.func @transform_5(%arg0: i32) -> (i32, i32) {
    %c0_i32 = arith.constant 0 : i32
    %c0_i32_0 = arith.constant 0 : i32
    %c0_i32_1 = arith.constant 0 : i32
    return %c0_i32, %c0_i32_0 : i32, i32
  }
  func.func @transform_6(%arg0: i32) -> (i32, i32) {
    %c0_i32 = arith.constant 0 : i32
    %c0_i32_0 = arith.constant 0 : i32
    %c0_i32_1 = arith.constant 0 : i32
    return %c0_i32, %c0_i32_0 : i32, i32
  }
  func.func @transform_7(%arg0: i32) -> (i32, i32, i32) {
    %c0_i32 = arith.constant 0 : i32
    %c0_i32_0 = arith.constant 0 : i32
    %c0_i32_1 = arith.constant 0 : i32
    return %arg0, %c0_i32, %c0_i32_0 : i32, i32, i32
  }
  func.func @transform_8(%arg0: i32) -> (i32, i32, i32) {
    %c0_i32 = arith.constant 0 : i32
    %c0_i32_0 = arith.constant 0 : i32
    %c0_i32_1 = arith.constant 0 : i32
    return %arg0, %c0_i32, %c0_i32_0 : i32, i32, i32
  }
}

</mosaic_0001>

<llo_original>
// kernel: encoding_layer_pallas.1
$region0: #{encoding_layer_pallas.1}
  #allocation0 [shape = 'u32[]', space=smem, size = 0x4, offset = 0x4, fixed_abs, tag = 'smem constant byte address 0x4 - core index']
  #allocation1 [shape = 'u32[144,128]{1,0:T(1,128)}', space=vmem, size = 0x12000, scoped, tag = 'internal scratch']
  %s0 = inlined_call_operand.vmem [shape: bf16[2,16,256], index: 0, kind: input, shape index: {}]
  %s1 = inlined_call_operand.vmem [shape: f32[2,8,1], index: 1, kind: input, shape index: {}]
  %s2 = inlined_call_operand.vmem [shape: bf16[4,8,16], index: 2, kind: input, shape index: {}]
  %s3 = inlined_call_operand.vmem [shape: f32[8,1], index: 3, kind: input, shape index: {}]
  %s4 = inlined_call_operand.vmem [shape: f32[8,1], index: 4, kind: input, shape index: {}]
  %s5 = inlined_call_operand.vmem [shape: f32[8,1], index: 5, kind: input, shape index: {}]
  %s6 = inlined_call_operand.vmem [shape: f32[1,128], index: 6, kind: input, shape index: {}]
  %s7 = inlined_call_operand.vmem [shape: f32[2,8,128], index: 7, kind: output, shape index: {0}]
  %s8 = inlined_call_operand.vmem [shape: f32[2,8,1], index: 8, kind: output, shape index: {1}]
  %9 = xla_tuple %s7, %s8
  %s10 = sld [smem:[#allocation0]]
  $region69: #{encoding_layer_pallas.1} parent=0
    _
  %s12 = ssub.s32 1, %s10
  %s13 = scalar_select 0, %s12, %s10
  loop: start=0, step=1, limit=4
  $region2: #{encoding_layer_pallas.1} parent=0 // loop_pre_header
    _
  $region3: #{encoding_layer_pallas.1} parent=0 // loop_header
    %s15 = sphi 0, %s19
    %p16 = scmp.ge.s32.totalorder %s15, 4
    %s25 = sphi 0, %s27
    %s28 = sphi 0, %s25
    %s29 = sphi 0, %s28
    %s45 = sphi 0, %s29
    %s51 = sphi 0, %s53
    %s54 = sphi 0, %s51
    %s55 = sphi 0, %s54
    %s71 = sphi 0, %s55
    %s75 = sphi 0, %s75
    %s77 = sphi 0, %s75
    %s78 = sphi 0, %s77
    %s92 = sphi 0, %s78
    %s96 = sphi 0, %s96
    %s98 = sphi 0, %s96
    %s99 = sphi 0, %s98
    %s113 = sphi 0, %s99
    %s117 = sphi 0, %s117
    %s119 = sphi 0, %s117
    %s120 = sphi 0, %s119
    %s134 = sphi 0, %s120
    %s138 = sphi 0, %s138
    %s140 = sphi 0, %s138
    %s141 = sphi 0, %s140
    %s155 = sphi 0, %s141
    %s159 = sphi 0, %s159
    %s161 = sphi 0, %s159
    %s162 = sphi 0, %s161
    %s176 = sphi 0, %s162
    %s182 = sphi 0, %s184
    %s185 = sphi 0, %s182
    %s186 = sphi 0, %s185
    %s202 = sphi 0, %s186
    %s208 = sphi 0, %s210
    %s211 = sphi 0, %s208
    %s212 = sphi 0, %s211
    %s228 = sphi 0, %s212
  $region4: #{encoding_layer_pallas.1} parent=0 // loop_header_branch
    %18 = sbr.rel (%p16) target = $region8
  $region5: #{encoding_layer_pallas.1} parent=0 // loop_body
    %s20 = ssub.s32 %s15, 1
    %s21 = ssub.s32 %s15, 2
    %s22 = sadd.s32 %s15, 1
    %s23 = ssub.s32 %s15, %s22
    %p24 = scmp.eq.s32.totalorder %s23, 0
    %s26 = sadd.s32 %s25, 1
    %s27 = scalar_select %p24, %s25, %s26
    %p30 = pneg %p24
    %p31 = scmp.eq.s32.totalorder %s15, 1
    %p32 = por %p30, %p31
    %p33 = scmp.ne.s32.totalorder %s25, %s28
    %p34 = scmp.eq.s32.totalorder %s15, 0
    %p35 = por %p33, %p34
    %p36 = scmp.ne.s32.totalorder %s25, %s28
    %p37 = scmp.eq.s32.totalorder %s20, 1
    %p38 = por %p36, %p37
    %p39 = scmp.ne.s32.totalorder %s28, %s29
    %p40 = scmp.eq.s32.totalorder %s20, 0
    %p41 = por %p39, %p40
    %p42 = scmp.ne.s32.totalorder %s28, %s29
    %p43 = scmp.eq.s32.totalorder %s21, 1
    %p44 = por %p42, %p43
    %p46 = scmp.ne.s32.totalorder %s29, %s45
    %p47 = scmp.eq.s32.totalorder %s21, 0
    %p48 = por %p46, %p47
    %s49 = ssub.s32 %s15, %s22
    %p50 = scmp.eq.s32.totalorder %s49, 0
    %s52 = sadd.s32 %s51, 1
    %s53 = scalar_select %p50, %s51, %s52
    %p56 = pneg %p50
    %p57 = scmp.eq.s32.totalorder %s15, 1
    %p58 = por %p56, %p57
    %p59 = scmp.ne.s32.totalorder %s51, %s54
    %p60 = scmp.eq.s32.totalorder %s15, 0
    %p61 = por %p59, %p60
    %p62 = scmp.ne.s32.totalorder %s51, %s54
    %p63 = scmp.eq.s32.totalorder %s20, 1
    %p64 = por %p62, %p63
    %p65 = scmp.ne.s32.totalorder %s54, %s55
    %p66 = scmp.eq.s32.totalorder %s20, 0
    %p67 = por %p65, %p66
    %p68 = scmp.ne.s32.totalorder %s54, %s55
    %p69 = scmp.eq.s32.totalorder %s21, 1
    %p70 = por %p68, %p69
    %p72 = scmp.ne.s32.totalorder %s55, %s71
    %p73 = scmp.eq.s32.totalorder %s21, 0
    %p74 = por %p72, %p73
    %s76 = sadd.s32 %s75, 1
    %p79 = scmp.eq.s32.totalorder %s15, 1
    %p80 = scmp.ne.s32.totalorder %s75, %s77
    %p81 = scmp.eq.s32.totalorder %s15, 0
    %p82 = por %p80, %p81
    %p83 = scmp.ne.s32.totalorder %s75, %s77
    %p84 = scmp.eq.s32.totalorder %s20, 1
    %p85 = por %p83, %p84
    %p86 = scmp.ne.s32.totalorder %s77, %s78
    %p87 = scmp.eq.s32.totalorder %s20, 0
    %p88 = por %p86, %p87
    %p89 = scmp.ne.s32.totalorder %s77, %s78
    %p90 = scmp.eq.s32.totalorder %s21, 1
    %p91 = por %p89, %p90
    %p93 = scmp.ne.s32.totalorder %s78, %s92
    %p94 = scmp.eq.s32.totalorder %s21, 0
    %p95 = por %p93, %p94
    %s97 = sadd.s32 %s96, 1
    %p100 = scmp.eq.s32.totalorder %s15, 1
    %p101 = scmp.ne.s32.totalorder %s96, %s98
    %p102 = scmp.eq.s32.totalorder %s15, 0
    %p103 = por %p101, %p102
    %p104 = scmp.ne.s32.totalorder %s96, %s98
    %p105 = scmp.eq.s32.totalorder %s20, 1
    %p106 = por %p104, %p105
    %p107 = scmp.ne.s32.totalorder %s98, %s99
    %p108 = scmp.eq.s32.totalorder %s20, 0
    %p109 = por %p107, %p108
    %p110 = scmp.ne.s32.totalorder %s98, %s99
    %p111 = scmp.eq.s32.totalorder %s21, 1
    %p112 = por %p110, %p111
    %p114 = scmp.ne.s32.totalorder %s99, %s113
    %p115 = scmp.eq.s32.totalorder %s21, 0
    %p116 = por %p114, %p115
    %s118 = sadd.s32 %s117, 1
    %p121 = scmp.eq.s32.totalorder %s15, 1
    %p122 = scmp.ne.s32.totalorder %s117, %s119
    %p123 = scmp.eq.s32.totalorder %s15, 0
    %p124 = por %p122, %p123
    %p125 = scmp.ne.s32.totalorder %s117, %s119
    %p126 = scmp.eq.s32.totalorder %s20, 1
    %p127 = por %p125, %p126
    %p128 = scmp.ne.s32.totalorder %s119, %s120
    %p129 = scmp.eq.s32.totalorder %s20, 0
    %p130 = por %p128, %p129
    %p131 = scmp.ne.s32.totalorder %s119, %s120
    %p132 = scmp.eq.s32.totalorder %s21, 1
    %p133 = por %p131, %p132
    %p135 = scmp.ne.s32.totalorder %s120, %s134
    %p136 = scmp.eq.s32.totalorder %s21, 0
    %p137 = por %p135, %p136
    %s139 = sadd.s32 %s138, 1
    %p142 = scmp.eq.s32.totalorder %s15, 1
    %p143 = scmp.ne.s32.totalorder %s138, %s140
    %p144 = scmp.eq.s32.totalorder %s15, 0
    %p145 = por %p143, %p144
    %p146 = scmp.ne.s32.totalorder %s138, %s140
    %p147 = scmp.eq.s32.totalorder %s20, 1
    %p148 = por %p146, %p147
    %p149 = scmp.ne.s32.totalorder %s140, %s141
    %p150 = scmp.eq.s32.totalorder %s20, 0
    %p151 = por %p149, %p150
    %p152 = scmp.ne.s32.totalorder %s140, %s141
    %p153 = scmp.eq.s32.totalorder %s21, 1
    %p154 = por %p152, %p153
    %p156 = scmp.ne.s32.totalorder %s141, %s155
    %p157 = scmp.eq.s32.totalorder %s21, 0
    %p158 = por %p156, %p157
    %s160 = sadd.s32 %s159, 1
    %p163 = scmp.eq.s32.totalorder %s15, 1
    %p164 = scmp.ne.s32.totalorder %s159, %s161
    %p165 = scmp.eq.s32.totalorder %s15, 0
    %p166 = por %p164, %p165
    %p167 = scmp.ne.s32.totalorder %s159, %s161
    %p168 = scmp.eq.s32.totalorder %s20, 1
    %p169 = por %p167, %p168
    %p170 = scmp.ne.s32.totalorder %s161, %s162
    %p171 = scmp.eq.s32.totalorder %s20, 0
    %p172 = por %p170, %p171
    %p173 = scmp.ne.s32.totalorder %s161, %s162
    %p174 = scmp.eq.s32.totalorder %s21, 1
    %p175 = por %p173, %p174
    %p177 = scmp.ne.s32.totalorder %s162, %s176
    %p178 = scmp.eq.s32.totalorder %s21, 0
    %p179 = por %p177, %p178
    %s180 = ssub.s32 %s15, %s22
    %p181 = scmp.eq.s32.totalorder %s180, 0
    %s183 = sadd.s32 %s182, 1
    %s184 = scalar_select %p181, %s182, %s183
    %p187 = pneg %p181
    %p188 = scmp.eq.s32.totalorder %s15, 1
    %p189 = por %p187, %p188
    %p190 = scmp.ne.s32.totalorder %s182, %s185
    %p191 = scmp.eq.s32.totalorder %s15, 0
    %p192 = por %p190, %p191
    %p193 = scmp.ne.s32.totalorder %s182, %s185
    %p194 = scmp.eq.s32.totalorder %s20, 1
    %p195 = por %p193, %p194
    %p196 = scmp.ne.s32.totalorder %s185, %s186
    %p197 = scmp.eq.s32.totalorder %s20, 0
    %p198 = por %p196, %p197
    %p199 = scmp.ne.s32.totalorder %s185, %s186
    %p200 = scmp.eq.s32.totalorder %s21, 1
    %p201 = por %p199, %p200
    %p203 = scmp.ne.s32.totalorder %s186, %s202
    %p204 = scmp.eq.s32.totalorder %s21, 0
    %p205 = por %p203, %p204
    %s206 = ssub.s32 %s15, %s22
    %p207 = scmp.eq.s32.totalorder %s206, 0
    %s209 = sadd.s32 %s208, 1
    %s210 = scalar_select %p207, %s208, %s209
    %p213 = pneg %p207
    %p214 = scmp.eq.s32.totalorder %s15, 1
    %p215 = por %p213, %p214
    %p216 = scmp.ne.s32.totalorder %s208, %s211
    %p217 = scmp.eq.s32.totalorder %s15, 0
    %p218 = por %p216, %p217
    %p219 = scmp.ne.s32.totalorder %s208, %s211
    %p220 = scmp.eq.s32.totalorder %s20, 1
    %p221 = por %p219, %p220
    %p222 = scmp.ne.s32.totalorder %s211, %s212
    %p223 = scmp.eq.s32.totalorder %s20, 0
    %p224 = por %p222, %p223
    %p225 = scmp.ne.s32.totalorder %s211, %s212
    %p226 = scmp.eq.s32.totalorder %s21, 1
    %p227 = por %p225, %p226
    %p229 = scmp.ne.s32.totalorder %s212, %s228
    %p230 = scmp.eq.s32.totalorder %s21, 0
    %p231 = por %p229, %p230
    %p232 = scmp.le.s32.totalorder 1, %s15
    %p233 = scmp.lt.s32.totalorder %s15, 3
    %p234 = pnand %p232, %p233
    %p235 = pneg %p234
    // Predicated region
    $region9: #{encoding_layer_pallas.1} parent=5 // pred_check
      _
    $region10: #{encoding_layer_pallas.1} parent=5 // pred_check_branch
      %237 = sbr.rel (%p234) target = $region12
    $region11: #{encoding_layer_pallas.1} parent=5 // pred_region
      %s238 = ssub.s32 %s15, 1
      // Predicated region
      $region13: #{encoding_layer_pallas.1} parent=11 // pred_check
        %p239 = pneg %p88
      $region14: #{encoding_layer_pallas.1} parent=11 // pred_check_branch
        %241 = sbr.rel (%p239) target = $region16
      $region15: #{encoding_layer_pallas.1} parent=11 // pred_region
        _
      $region16: #{encoding_layer_pallas.1} parent=11 // pred_fallthru
        _
      // Predicated region
      $region17: #{encoding_layer_pallas.1} parent=11 // pred_check
        %p242 = pneg %p109
      $region18: #{encoding_layer_pallas.1} parent=11 // pred_check_branch
        %244 = sbr.rel (%p242) target = $region20
      $region19: #{encoding_layer_pallas.1} parent=11 // pred_region
        _
      $region20: #{encoding_layer_pallas.1} parent=11 // pred_fallthru
        _
      // Predicated region
      $region21: #{encoding_layer_pallas.1} parent=11 // pred_check
        %p245 = pneg %p130
      $region22: #{encoding_layer_pallas.1} parent=11 // pred_check_branch
        %247 = sbr.rel (%p245) target = $region24
      $region23: #{encoding_layer_pallas.1} parent=11 // pred_region
        _
      $region24: #{encoding_layer_pallas.1} parent=11 // pred_fallthru
        _
      // Predicated region
      $region25: #{encoding_layer_pallas.1} parent=11 // pred_check
        %p248 = pneg %p151
      $region26: #{encoding_layer_pallas.1} parent=11 // pred_check_branch
        %250 = sbr.rel (%p248) target = $region28
      $region27: #{encoding_layer_pallas.1} parent=11 // pred_region
        _
      $region28: #{encoding_layer_pallas.1} parent=11 // pred_fallthru
        _
      // Predicated region
      $region29: #{encoding_layer_pallas.1} parent=11 // pred_check
        %p251 = pneg %p172
      $region30: #{encoding_layer_pallas.1} parent=11 // pred_check_branch
        %253 = sbr.rel (%p251) target = $region32
      $region31: #{encoding_layer_pallas.1} parent=11 // pred_region
        _
      $region32: #{encoding_layer_pallas.1} parent=11 // pred_fallthru
        _
    $region12: #{encoding_layer_pallas.1} parent=5 // pred_fallthru
      _
    %p254 = scmp.lt.s32.totalorder %s15, 2
    // Predicated region
    $region33: #{encoding_layer_pallas.1} parent=5 // pred_check
      %p255 = pneg %p254
    $region34: #{encoding_layer_pallas.1} parent=5 // pred_check_branch
      %257 = sbr.rel (%p255) target = $region36
    $region35: #{encoding_layer_pallas.1} parent=5 // pred_region
      // Predicated region
      $region37: #{encoding_layer_pallas.1} parent=35 // pred_check
        %p258 = pneg %p35
      $region38: #{encoding_layer_pallas.1} parent=35 // pred_check_branch
        %260 = sbr.rel (%p258) target = $region40
      $region39: #{encoding_layer_pallas.1} parent=35 // pred_region
        %p261 = scmp.lt.s32.totalorder %s15, 1
        %s262 = scalar_select %p261, %s15, 1
        %s263 = smul.addr %s262, 4
        %s264 = smul.addr %s263, 4
        %s265 = scalar_lea.vmem %s0, %s264
      $region40: #{encoding_layer_pallas.1} parent=35 // pred_fallthru
        _
      // Predicated region
      $region41: #{encoding_layer_pallas.1} parent=35 // pred_check
        %p266 = pneg %p61
      $region42: #{encoding_layer_pallas.1} parent=35 // pred_check_branch
        %268 = sbr.rel (%p266) target = $region44
      $region43: #{encoding_layer_pallas.1} parent=35 // pred_region
        %p269 = scmp.lt.s32.totalorder %s15, 1
        %s270 = scalar_select %p269, %s15, 1
        %s271 = smul.addr %s270, 8
        %s272 = scalar_lea.vmem %s1, %s271
      $region44: #{encoding_layer_pallas.1} parent=35 // pred_fallthru
        _
    $region36: #{encoding_layer_pallas.1} parent=5 // pred_fallthru
      _
    %p273 = scmp.le.s32.totalorder 1, %s15
    %p274 = scmp.lt.s32.totalorder %s15, 3
    %p275 = pnand %p273, %p274
    %p276 = pneg %p275
    // Predicated region
    $region45: #{encoding_layer_pallas.1} parent=5 // pred_check
      _
    $region46: #{encoding_layer_pallas.1} parent=5 // pred_check_branch
      %278 = sbr.rel (%p275) target = $region48
    $region47: #{encoding_layer_pallas.1} parent=5 // pred_region
      %s279 = ssub.s32 %s15, 1
      %p280 = scmp.lt.s32.totalorder %s20, 1
      %s281 = scalar_select %p280, %s20, 1
      %s282 = smul.addr %s281, 4
      %s283 = smul.addr %s282, 4
      %s284 = scalar_lea.vmem %s0, %s283
      %p285 = pneg %p41
      %p286 = pneg %p38
      %p287 = scmp.lt.s32.totalorder %s20, 1
      %s288 = scalar_select %p287, %s20, 1
      %s289 = smul.addr %s288, 8
      %s290 = scalar_lea.vmem %s1, %s289
      %p291 = pneg %p67
      %p292 = pneg %p64
      %p293 = pneg %p88
      %p294 = pneg %p85
      %p295 = pneg %p109
      %p296 = pneg %p106
      %p297 = pneg %p130
      %p298 = pneg %p127
      %p299 = pneg %p151
      %p300 = pneg %p148
      %p301 = pneg %p172
      %p302 = pneg %p169
      %p303 = pneg %p198
      %p304 = pneg %p195
      %p305 = scmp.lt.s32.totalorder %s20, 1
      %s306 = scalar_select %p305, %s20, 1
      %s307 = smul.addr %s306, 8
      %s308 = scalar_lea.vmem %s7, %s307
      %p309 = pneg %p224
      %p310 = pneg %p221
      %p311 = scmp.lt.s32.totalorder %s20, 1
      %s312 = scalar_select %p311, %s20, 1
      %s313 = smul.addr %s312, 8
      %s314 = scalar_lea.vmem %s8, %s313
      %p315 = scmp.lt.s32.totalorder %s20, 1
      %s316 = scalar_select %p315, %s20, 1
      %s317 = smul.addr %s316, 4
      %s318 = smul.addr %s317, 4
      %s319 = scalar_lea.vmem %s0, %s318
      %p320 = scmp.lt.s32.totalorder %s20, 1
      %s321 = scalar_select %p320, %s20, 1
      %s322 = smul.addr %s321, 8
      %s323 = scalar_lea.vmem %s1, %s322
      %p324 = scmp.lt.s32.totalorder %s20, 1
      %s325 = scalar_select %p324, %s20, 1
      %s326 = smul.addr %s325, 8
      %s327 = scalar_lea.vmem %s7, %s326
      %p328 = scmp.lt.s32.totalorder %s20, 1
      %s329 = scalar_select %p328, %s20, 1
      %s330 = smul.addr %s329, 8
      %s331 = scalar_lea.vmem %s8, %s330
      %v333 = vld [vmem:[%s6] sm:$0x1]
      %v334 = vld [vmem:[%s319] sm:$0xff]
      %v335 = vld [vmem:[%s319 + $0x8] sm:$0xff]
      %v336 = vld [vmem:[%s2] sm:$0xf]
      %s337 = scalar_lea.vmem %s2, 4
      %v338 = vld [vmem:[%s337] sm:$0xf]
      %v341 = vunpack.c.l.b16 %v334
      %v342 = vunpack.c.h.b16 %v334
      %v343 = vunpack.c.l.b16 %v335
      %v344 = vunpack.c.h.b16 %v335
      %v345 = vpack.c.b16 %v343, %v341
      %v346 = vpack.c.b16 %v344, %v342
      %347 = vrot.lane.b32.xlu0 %v345, 127
      %v348 = vpop.permute.xlu0 %347
      %349 = vrot.lane.b32.xlu0 %v346, 127
      %v350 = vpop.permute.xlu0 %349
      %vm351 = vcmask 1039360
      %v352 = vsel %vm351, %v348, %v350
      %vm354 = vcmask 130048
      %v356 = vsel %vm354, %v338, 0
      %358 = vmatprep.subr.bf16.mxu0 0
      %359 = vmatpush1.bf16.msra.mxu0 0
      %360 = vmatprep.subr.bf16.mxu0 0
      %361 = vmatpush1.bf16.msra.mxu0 0
      %362 = vmatprep.subr.bf16.mxu0 0
      %363 = vmatpush1.bf16.msra.mxu0 0
      %364 = vmatprep.subr.bf16.mxu0 0
      %365 = vmatpush1.bf16.msra.mxu0 0
      %366 = vmatprep.subr.bf16.mxu0 0
      %367 = vmatpush1.bf16.msra.mxu0 0
      %368 = vmatprep.subr.bf16.mxu0 0
      %369 = vmatpush1.bf16.msra.mxu0 0
      %370 = vmatprep.subr.bf16.mxu0 0
      %371 = vmatpush1.bf16.msra.mxu0 0
      %372 = vmatprep.subr.bf16.mxu0 0
      %373 = vmatpush1.bf16.msra.mxu0 %v352
      %374 = vmatprep.subr.bf16.mxu0 0
      %375 = vmatpush2.bf16.msra.mxu0 0
      %376 = vmatprep.subr.bf16.mxu0 0
      %377 = vmatpush2.bf16.msra.mxu0 0
      %378 = vmatprep.subr.bf16.mxu0 0
      %379 = vmatpush2.bf16.msra.mxu0 0
      %380 = vmatprep.subr.bf16.mxu0 0
      %381 = vmatpush2.bf16.msra.mxu0 0
      %382 = vmatprep.subr.bf16.mxu0 0
      %383 = vmatpush2.bf16.msra.mxu0 0
      %384 = vmatprep.subr.bf16.mxu0 0
      %385 = vmatpush2.bf16.msra.mxu0 0
      %386 = vmatprep.subr.bf16.mxu0 0
      %387 = vmatpush2.bf16.msra.mxu0 0
      %388 = vmatprep.subr.bf16.mxu0 0
      %389 = vmatpush2.bf16.msra.mxu0 0
      %390 = vmatprep.mubr.bf16.mxu0 0
      %391 = vmatmul.mubr.bf16.gmra.mxu0 %v356
      %v392 = vpop.f32.mrf.mxu0
      %v393 = vadd.f32 0.0, %v392
      %v394 = vpop.f32.mrf.mxu0
      %v395 = vpop.f32.mrf.mxu0
      %v396 = vpop.f32.mrf.mxu0
      %397 = vdwg.mxu0
      %v400 = vsel %vm354, %v336, 0
      %402 = vmatprep.subr.bf16.mxu0 0
      %403 = vmatpush1.bf16.msra.mxu0 0
      %404 = vmatprep.subr.bf16.mxu0 0
      %405 = vmatpush1.bf16.msra.mxu0 0
      %406 = vmatprep.subr.bf16.mxu0 0
      %407 = vmatpush1.bf16.msra.mxu0 0
      %408 = vmatprep.subr.bf16.mxu0 0
      %409 = vmatpush1.bf16.msra.mxu0 0
      %410 = vmatprep.subr.bf16.mxu0 0
      %411 = vmatpush1.bf16.msra.mxu0 0
      %412 = vmatprep.subr.bf16.mxu0 0
      %413 = vmatpush1.bf16.msra.mxu0 0
      %414 = vmatprep.subr.bf16.mxu0 0
      %415 = vmatpush1.bf16.msra.mxu0 0
      %416 = vmatprep.subr.bf16.mxu0 0
      %417 = vmatpush1.bf16.msra.mxu0 %v345
      %418 = vmatprep.subr.bf16.mxu0 0
      %419 = vmatpush2.bf16.msra.mxu0 0
      %420 = vmatprep.subr.bf16.mxu0 0
      %421 = vmatpush2.bf16.msra.mxu0 0
      %422 = vmatprep.subr.bf16.mxu0 0
      %423 = vmatpush2.bf16.msra.mxu0 0
      %424 = vmatprep.subr.bf16.mxu0 0
      %425 = vmatpush2.bf16.msra.mxu0 0
      %426 = vmatprep.subr.bf16.mxu0 0
      %427 = vmatpush2.bf16.msra.mxu0 0
      %428 = vmatprep.subr.bf16.mxu0 0
      %429 = vmatpush2.bf16.msra.mxu0 0
      %430 = vmatprep.subr.bf16.mxu0 0
      %431 = vmatpush2.bf16.msra.mxu0 0
      %432 = vmatprep.subr.bf16.mxu0 0
      %433 = vmatpush2.bf16.msra.mxu0 0
      %434 = vmatprep.mubr.bf16.mxu0 0
      %435 = vmatmul.mubr.bf16.gmra.mxu0 %v400
      %v436 = vpop.f32.mrf.mxu0
      %v437 = vadd.f32 %v393, %v436
      %v438 = vpop.f32.mrf.mxu0
      %v439 = vpop.f32.mrf.mxu0
      %v440 = vpop.f32.mrf.mxu0
      %441 = vdwg.mxu0
      %s442 = scalar_lea.vmem %s2, 8
      %v443 = vld [vmem:[%s442] sm:$0xf]
      %444 = vrot.lane.b32.xlu0 %v345, 119
      %v445 = vpop.permute.xlu0 %444
      %446 = vrot.lane.b32.xlu0 %v346, 119
      %v447 = vpop.permute.xlu0 %446
      %vm448 = vcmask 973824
      %v449 = vsel %vm448, %v445, %v447
      %v452 = vsel %vm354, %v443, 0
      %454 = vmatprep.subr.bf16.mxu0 0
      %455 = vmatpush1.bf16.msra.mxu0 0
      %456 = vmatprep.subr.bf16.mxu0 0
      %457 = vmatpush1.bf16.msra.mxu0 0
      %458 = vmatprep.subr.bf16.mxu0 0
      %459 = vmatpush1.bf16.msra.mxu0 0
      %460 = vmatprep.subr.bf16.mxu0 0
      %461 = vmatpush1.bf16.msra.mxu0 0
      %462 = vmatprep.subr.bf16.mxu0 0
      %463 = vmatpush1.bf16.msra.mxu0 0
      %464 = vmatprep.subr.bf16.mxu0 0
      %465 = vmatpush1.bf16.msra.mxu0 0
      %466 = vmatprep.subr.bf16.mxu0 0
      %467 = vmatpush1.bf16.msra.mxu0 0
      %468 = vmatprep.subr.bf16.mxu0 0
      %469 = vmatpush1.bf16.msra.mxu0 %v449
      %470 = vmatprep.subr.bf16.mxu0 0
      %471 = vmatpush2.bf16.msra.mxu0 0
      %472 = vmatprep.subr.bf16.mxu0 0
      %473 = vmatpush2.bf16.msra.mxu0 0
      %474 = vmatprep.subr.bf16.mxu0 0
      %475 = vmatpush2.bf16.msra.mxu0 0
      %476 = vmatprep.subr.bf16.mxu0 0
      %477 = vmatpush2.bf16.msra.mxu0 0
      %478 = vmatprep.subr.bf16.mxu0 0
      %479 = vmatpush2.bf16.msra.mxu0 0
      %480 = vmatprep.subr.bf16.mxu0 0
      %481 = vmatpush2.bf16.msra.mxu0 0
      %482 = vmatprep.subr.bf16.mxu0 0
      %483 = vmatpush2.bf16.msra.mxu0 0
      %484 = vmatprep.subr.bf16.mxu0 0
      %485 = vmatpush2.bf16.msra.mxu0 0
      %486 = vmatprep.mubr.bf16.mxu0 0
      %487 = vmatmul.mubr.bf16.gmra.mxu0 %v452
      %v488 = vpop.f32.mrf.mxu0
      %v489 = vadd.f32 0.0, %v488
      %v490 = vpop.f32.mrf.mxu0
      %v491 = vpop.f32.mrf.mxu0
      %v492 = vpop.f32.mrf.mxu0
      %493 = vdwg.mxu0
      %v494 = vadd.f32 %v437, %v489
      %s495 = scalar_lea.vmem %s2, 12
      %v496 = vld [vmem:[%s495] sm:$0xf]
      %497 = vrot.lane.b32.xlu0 %v345, 118
      %v498 = vpop.permute.xlu0 %497
      %499 = vrot.lane.b32.xlu0 %v346, 118
      %v500 = vpop.permute.xlu0 %499
      %vm501 = vcmask 965632
      %v502 = vsel %vm501, %v498, %v500
      %v505 = vsel %vm354, %v496, 0
      %507 = vmatprep.subr.bf16.mxu0 0
      %508 = vmatpush1.bf16.msra.mxu0 0
      %509 = vmatprep.subr.bf16.mxu0 0
      %510 = vmatpush1.bf16.msra.mxu0 0
      %511 = vmatprep.subr.bf16.mxu0 0
      %512 = vmatpush1.bf16.msra.mxu0 0
      %513 = vmatprep.subr.bf16.mxu0 0
      %514 = vmatpush1.bf16.msra.mxu0 0
      %515 = vmatprep.subr.bf16.mxu0 0
      %516 = vmatpush1.bf16.msra.mxu0 0
      %517 = vmatprep.subr.bf16.mxu0 0
      %518 = vmatpush1.bf16.msra.mxu0 0
      %519 = vmatprep.subr.bf16.mxu0 0
      %520 = vmatpush1.bf16.msra.mxu0 0
      %521 = vmatprep.subr.bf16.mxu0 0
      %522 = vmatpush1.bf16.msra.mxu0 %v502
      %523 = vmatprep.subr.bf16.mxu0 0
      %524 = vmatpush2.bf16.msra.mxu0 0
      %525 = vmatprep.subr.bf16.mxu0 0
      %526 = vmatpush2.bf16.msra.mxu0 0
      %527 = vmatprep.subr.bf16.mxu0 0
      %528 = vmatpush2.bf16.msra.mxu0 0
      %529 = vmatprep.subr.bf16.mxu0 0
      %530 = vmatpush2.bf16.msra.mxu0 0
      %531 = vmatprep.subr.bf16.mxu0 0
      %532 = vmatpush2.bf16.msra.mxu0 0
      %533 = vmatprep.subr.bf16.mxu0 0
      %534 = vmatpush2.bf16.msra.mxu0 0
      %535 = vmatprep.subr.bf16.mxu0 0
      %536 = vmatpush2.bf16.msra.mxu0 0
      %537 = vmatprep.subr.bf16.mxu0 0
      %538 = vmatpush2.bf16.msra.mxu0 0
      %539 = vmatprep.mubr.bf16.mxu0 0
      %540 = vmatmul.mubr.bf16.gmra.mxu0 %v505
      %v541 = vpop.f32.mrf.mxu0
      %v542 = vadd.f32 0.0, %v541
      %v543 = vpop.f32.mrf.mxu0
      %v544 = vpop.f32.mrf.mxu0
      %v545 = vpop.f32.mrf.mxu0
      %546 = vdwg.mxu0
      %v547 = vadd.f32 %v494, %v542
      %v548 = vld [vmem:[%s3] sm:$0xff]
      %550 = vset.pattern.permute.xlu0 0
      %551 = vperm.xlu0 %550, %v548
      %v552 = vpop.permute.xlu0 %551
      %v554 = vadd.f32 %v547, %v552
      %v556 = vlaneseq
      %v557 = vshrl.u32 %v556, 7
      %v558 = vsub.s32 0, %v557
      %v559 = vrot.slane %v333, %v558
      %v561 = vmul.f32 %v554, %v559
      %562 = vadd.xlane.f32.xlu0 %v561
      %v563 = vpop.xlane.xlu0 %562
      %v564 = vmul.f32 %v563, 0.015625
      %v565 = vmul.f32 %v561, %v554
      %566 = vadd.xlane.f32.xlu0 %v565
      %v567 = vpop.xlane.xlu0 %566
      %v568 = vmul.f32 %v567, 0.015625
      %v569 = vmul.f32 %v564, %v564
      %v570 = vsub.f32 %v568, %v569
      %v571 = vmax.f32 %v570, 0.0
      %vm572 = vcmask 7168
      %573 = vst.msk [vmem:[%s331] sm:$0xff] %vm572, %v564
      %v574 = vld [vmem:[%s4] sm:$0xff]
      %v575 = vadd.f32 %v571, 1e-05
      %v576 = vrsqrt.pop %v575
      %v577 = vmul.f32 %v574, %v576
      %v578 = vld [vmem:[%s5] sm:$0xff]
      %v579 = vmul.f32 %v564, %v577
      %v580 = vsub.f32 %v578, %v579
      %v581 = vld [vmem:[%s323] sm:$0xff]
      %v582 = vadd.f32 %v580, %v581
      %584 = vset.pattern.permute.xlu0 0
      %585 = vperm.xlu0 %584, %v577
      %v586 = vpop.permute.xlu0 %585
      %v588 = vmul.f32 %v554, %v586
      %590 = vset.pattern.permute.xlu0 0
      %591 = vperm.xlu0 %590, %v582
      %v592 = vpop.permute.xlu0 %591
      %v594 = vadd.f32 %v588, %v592
      %595 = vst [vmem:[%s327] sm:$0xff] %v594
      %p596 = scmp.lt.s32.totalorder %s20, 1
      %s597 = scalar_select %p596, %s20, 1
      %s598 = smul.addr %s597, 8
      %s599 = scalar_lea.vmem %s7, %s598
      %p600 = scmp.lt.s32.totalorder %s20, 1
      %s601 = scalar_select %p600, %s20, 1
      %s602 = smul.addr %s601, 8
      %s603 = scalar_lea.vmem %s8, %s602
      // Predicated region
      $region49: #{encoding_layer_pallas.1} parent=47 // pred_check
        %p604 = pneg %p195
      $region50: #{encoding_layer_pallas.1} parent=47 // pred_check_branch
        %606 = sbr.rel (%p604) target = $region52
      $region51: #{encoding_layer_pallas.1} parent=47 // pred_region
        _
      $region52: #{encoding_layer_pallas.1} parent=47 // pred_fallthru
        _
      // Predicated region
      $region53: #{encoding_layer_pallas.1} parent=47 // pred_check
        %p607 = pneg %p221
      $region54: #{encoding_layer_pallas.1} parent=47 // pred_check_branch
        %609 = sbr.rel (%p607) target = $region56
      $region55: #{encoding_layer_pallas.1} parent=47 // pred_region
        _
      $region56: #{encoding_layer_pallas.1} parent=47 // pred_fallthru
        _
    $region48: #{encoding_layer_pallas.1} parent=5 // pred_fallthru
      _
    %p610 = scmp.le.s32.totalorder 2, %s15
    // Predicated region
    $region57: #{encoding_layer_pallas.1} parent=5 // pred_check
      %p611 = pneg %p610
    $region58: #{encoding_layer_pallas.1} parent=5 // pred_check_branch
      %613 = sbr.rel (%p611) target = $region60
    $region59: #{encoding_layer_pallas.1} parent=5 // pred_region
      %s614 = ssub.s32 %s15, 2
      // Predicated region
      $region61: #{encoding_layer_pallas.1} parent=59 // pred_check
        %p615 = pneg %p201
      $region62: #{encoding_layer_pallas.1} parent=59 // pred_check_branch
        %617 = sbr.rel (%p615) target = $region64
      $region63: #{encoding_layer_pallas.1} parent=59 // pred_region
        %p618 = scmp.lt.s32.totalorder %s21, 1
        %s619 = scalar_select %p618, %s21, 1
        %s620 = smul.addr %s619, 8
        %s621 = scalar_lea.vmem %s7, %s620
      $region64: #{encoding_layer_pallas.1} parent=59 // pred_fallthru
        _
      // Predicated region
      $region65: #{encoding_layer_pallas.1} parent=59 // pred_check
        %p622 = pneg %p227
      $region66: #{encoding_layer_pallas.1} parent=59 // pred_check_branch
        %624 = sbr.rel (%p622) target = $region68
      $region67: #{encoding_layer_pallas.1} parent=59 // pred_region
        %p625 = scmp.lt.s32.totalorder %s21, 1
        %s626 = scalar_select %p625, %s21, 1
        %s627 = smul.addr %s626, 8
        %s628 = scalar_lea.vmem %s8, %s627
      $region68: #{encoding_layer_pallas.1} parent=59 // pred_fallthru
        _
    $region60: #{encoding_layer_pallas.1} parent=5 // pred_fallthru
      _
  $region6: #{encoding_layer_pallas.1} parent=0 // loop_footer
    %s19 = sadd.s32 1, %s15
  $region7: #{encoding_layer_pallas.1} parent=0 // loop_footer_branch
    %14 = sbr.rel target = $region3
  $region8: #{encoding_layer_pallas.1} parent=0 // loop_exit
    _

</llo_original>
